<compile_context>
chip_gen: v7x
topology: tpu7x:2x2x1
jax: 0.10.0
libtpu: 0.0.40
codegen_flags: <defaults>
</compile_context>

<pallas_src>
import jax
import jax.numpy as jnp
from jax.experimental import pallas as pl
from jax.experimental.pallas import tpu as pltpu


def _hbm_copy_kernel(x_hbm, o_hbm, sem):
    # Entire forward pass of GetFeatures (materialized variant): one
    # whole-array HBM -> HBM DMA.  Pure DMA-bandwidth bound on v5e/v6e/v7x.
    cp = pltpu.make_async_copy(x_hbm, o_hbm, sem)
    cp.start()
    cp.wait()


def get_features_pallas_copy(x: jax.Array) -> jax.Array:
    """Materialize a copy of `x` via a Pallas HBM->HBM DMA (any shape/dtype)."""
    if x.size == 0:
        return x
    nbytes = int(x.size) * jnp.dtype(x.dtype).itemsize
    return pl.pallas_call(
        _hbm_copy_kernel,
        out_shape=jax.ShapeDtypeStruct(x.shape, x.dtype),
        # Raw HBM refs in/out: the kernel drives the DMA itself, no BlockSpec
        # tiling, no VMEM staging, no alignment/padding requirements.
        in_specs=[pl.BlockSpec(memory_space=pl.ANY)],
        out_specs=pl.BlockSpec(memory_space=pl.ANY),
        scratch_shapes=[pltpu.SemaphoreType.DMA],
        cost_estimate=pl.CostEstimate(
            flops=0,
            transcendentals=0,
            bytes_accessed=2 * nbytes,   # exact: one read + one write of x
        ),
    )(x)


class GetFeatures:
    """JAX/Pallas port of the PyTorch GetFeatures module.

    forward(x): stores the tensor in self.features and returns it, mirroring
    `self.features = x; return x`.

    By default the identity is elided (zero HBM traffic — the top perf
    recommendation).  Pass materialize_copy=True to force a distinct buffer
    produced by the Pallas HBM->HBM DMA kernel.
    """

    def __init__(self, materialize_copy: bool = False):
        # No parameters in the original module.
        self.features = None
        self.materialize_copy = materialize_copy

    def __call__(self, x: jax.Array) -> jax.Array:
        return self.forward(x)

    def forward(self, x: jax.Array) -> jax.Array:
        if self.materialize_copy:
            x = get_features_pallas_copy(x)
        # TODO(synk): `self.features` is Python-side module state (not a device
        # op); it simply aliases the returned array, exactly like PyTorch.
        self.features = x
        return x


if __name__ == "__main__":
    key = jax.random.PRNGKey(0)
    # Small NCHW input consistent with a VAE feature map: batch=2, C=4, H=W=16.
    x = jax.random.normal(key, (2, 4, 16, 16), dtype=jnp.float32)

    # 1) Default (recommended) hot path: zero-copy identity.
    mod = GetFeatures()
    y = mod(x)
    jax.block_until_ready(y)
    assert y.shape == x.shape and y.dtype == x.dtype
    assert bool(jnp.all(y == x))
    assert mod.features is not None
    assert bool(jnp.all(mod.features == x))

    # 2) Flagged path: materialized copy through the Pallas HBM->HBM DMA kernel.
    mod_copy = GetFeatures(materialize_copy=True)
    y2 = mod_copy(x)
    jax.block_until_ready(y2)
    assert y2.shape == x.shape and y2.dtype == x.dtype
    assert bool(jnp.all(y2 == x))
    assert mod_copy.features is not None
    assert bool(jnp.all(mod_copy.features == x))

    # 3) Robustness checks the old pad/slice fallback could not do cheaply:
    #    awkward (non-tile-aligned) shape, f32.
    x_odd = jax.random.normal(jax.random.PRNGKey(1), (3, 5, 7), dtype=jnp.float32)
    y_odd = get_features_pallas_copy(x_odd)
    jax.block_until_ready(y_odd)
    assert bool(jnp.all(y_odd == x_odd))

    #    bf16 input (dtype-dependent sublane tiling concern is moot: pure DMA).
    x_bf = jax.random.normal(jax.random.PRNGKey(2), (2, 4, 16, 16)).astype(jnp.bfloat16)
    y_bf = get_features_pallas_copy(x_bf)
    jax.block_until_ready(y_bf)
    assert y_bf.dtype == jnp.bfloat16
    assert bool(jnp.all(y_bf == x_bf))

    print("KERNEL_OK")
</pallas_src>

<mosaic_0001>
module attributes {stable_mosaic.version = 11 : i64} {
  func.func @_hbm_copy_kernel(%arg0: memref<2x4x16x16xf32, #tpu.memory_space<any>>, %arg1: memref<2x4x16x16xf32, #tpu.memory_space<any>>, %arg2: memref<!tpu.dma_semaphore, #tpu.memory_space<semaphore_mem>>) attributes {dimension_semantics = [], scalar_prefetch = 0 : i64, scratch_operands = 1 : i64, tpu.core_type = #tpu.core_type<tc>} {
    tpu.enqueue_dma source(%arg0 : memref<2x4x16x16xf32, #tpu.memory_space<any>>) target(%arg1 : memref<2x4x16x16xf32, #tpu.memory_space<any>>) target_semaphore(%arg2 : memref<!tpu.dma_semaphore, #tpu.memory_space<semaphore_mem>>)
    tpu.wait_dma2 semaphore(%arg2 : memref<!tpu.dma_semaphore, #tpu.memory_space<semaphore_mem>>) src(%arg0 : memref<2x4x16x16xf32, #tpu.memory_space<any>>) dst(%arg1 : memref<2x4x16x16xf32, #tpu.memory_space<any>>)
    return
  }
}

</mosaic_0001>

<llo_original>
// kernel: tpu_custom_call.1
$region0: #{tpu_custom_call.1}
  #allocation0 [shape = 'u32[]', space=smem, size = 0x4, offset = 0x4, fixed_abs, tag = 'smem constant byte address 0x4 - core index']
  #allocation1 [shape = 'u32[144,128]{1,0:T(1,128)}', space=vmem, size = 0x12000, scoped, tag = 'internal scratch']
  #allocation2 [shape = 's32[1]{0}', space=sflag, size = 0x4, scoped, tag = 'scratch operand']
  #allocation3 [shape = 's32[]', space=sflag, size = 0x4, offset = 0, fixed_abs, tag = 'sflag constant byte address 0x0 - dummy sync flag']
  #allocation4 [shape = 'u32[0]{0}', space=smem, size = 0, offset = 0, fixed_abs, tag = 'smem constant byte address 0x0 - null']
  %s0 = inlined_call_operand.hbm [shape: f32[2,4,16,16], index: 0, kind: input, shape index: {}]
  %s1 = inlined_call_operand.hbm [shape: f32[2,4,16,16], index: 1, kind: output, shape index: {}]
  %s2 = sld [smem:[#allocation0]]
  $region2: #{tpu_custom_call.1} parent=0
    _
  %s4 = ssub.s32 1, %s2
  %s5 = scalar_select 0, %s4, %s2
  %s7 = sshll.u32 1, 14
  %s8 = sxor.u32 4294967295, %s7
  %s11 = sshll.u32 3, 24
  %s12 = sxor.u32 4294967295, %s11
  %s13 = sand.u32 0, %s12
  %s15 = sor.u32 %s13, 0
  %18 = dma.general %s0, 2048, %s1, [#allocation2], [#allocation3], [#allocation4], %s15, 0
  %s19 = smul.u32 2, 4
  %s20 = smul.u32 %s19, 16
  %s21 = smul.u32 %s20, 1
  %s22 = sshll.u32 %s21, 4
  %23 = dma.done [#allocation2], %s22
  %24 = vsyncmov [#allocation2]
  %s25 = vpop.sfrf %24
  %p26 = scmp.eq.s32.totalorder %s25, 0
  %p27 = pneg %p26
  %29 = shalt.err (%p27)

</llo_original>
